<compile_context>
chip_gen: v7x
topology: tpu7x:2x2x1
jax: 0.10.0
libtpu: 0.0.40
codegen_flags: <defaults>
</compile_context>

<pallas_src>
import numpy as np

import jax
import jax.numpy as jnp
from jax.experimental import pallas as pl
from jax.experimental.pallas import tpu as pltpu


def _round_up(x, m):
    return (x + m - 1) // m * m


def _cgconv_block_kernel(offs_ref, tiles_ref, dst_ref, z_ref, x_ref, wfs_ref,
                         bfs_ref, w1_ref, b1_ref, out_ref, acc_ref):
    n_tile, fp = x_ref.shape
    e_tile = z_ref.shape[0]
    n = pl.program_id(0)
    e = pl.program_id(1)

    @pl.when(e == 0)
    def _init():
        acc_ref[...] = jnp.zeros_like(acc_ref)

    # Only real edge tiles of this node tile's destination group do work;
    # over-extended grid steps (e >= tiles[n]) are skipped entirely.
    @pl.when(e < tiles_ref[n])
    def _accumulate():
        # Fused edge-gate projections: [f | s] = z @ W_fs + b_fs
        # (bf16 MXU operands, f32 accumulation).
        fs = jnp.dot(z_ref[...], wfs_ref[...],
                     preferred_element_type=jnp.float32) + bfs_ref[...]
        f = fs[:, :fp]
        s = fs[:, fp:]
        # sigmoid via EUP approx reciprocal; exp arg clamped so it never infs.
        gate = pl.reciprocal(1.0 + jnp.exp(jnp.minimum(-f, 80.0)), approx=True)
        # softplus with the PyTorch threshold=20 convention.
        soft = jnp.where(s > 20.0, s,
                         jnp.log(1.0 + jnp.exp(jnp.minimum(s, 20.0))))
        msg = (gate * soft).astype(jnp.bfloat16)                 # (E_tile, Fp)

        # Tile-local one-hot scatter-add on the MXU: row i collects the edges
        # whose destination is node n*N_TILE + i.  Sentinel (padded) edges
        # carry dst == N_pad and never match.
        local = dst_ref[...] - n * n_tile                        # (1, E_tile)
        onehot = (jax.lax.broadcasted_iota(jnp.int32, (n_tile, e_tile), 0)
                  == local).astype(jnp.bfloat16)                 # (N_tile, E_tile)
        acc_ref[...] += jnp.dot(onehot, msg,
                                preferred_element_type=jnp.float32)

    # Finalize: CGConv residual + MLP (Linear + ReLU), lane-dense f32 store.
    @pl.when(e == pl.num_programs(1) - 1)
    def _finalize():
        conv_out = x_ref[...] + acc_ref[...]
        h = jnp.dot(conv_out, w1_ref[...],
                    preferred_element_type=jnp.float32) + b1_ref[...]
        out_ref[...] = jnp.maximum(h, 0.0)


def cgconv_block(x, edge_index, edge_attr, params, *, n_tile=None, e_tile=None):
    """x: (N, F) f32, edge_index: (2, E) i32, edge_attr: (E, D) f32.

    NOTE: the wrapper does host-side (numpy) CSR grouping of edges by
    destination node tile, so it is not jit-traceable; call it eagerly
    (the pallas_call itself is compiled).
    """
    N, F = x.shape
    E = edge_index.shape[1]
    D = edge_attr.shape[1]
    K = 2 * F + D

    # Lane-dense feature and contraction dims.
    FP = _round_up(F, 128)
    KP = _round_up(K, 128)

    # Tile sizes (review: big tiles, but bounded so they fit every generation's
    # scoped-VMEM default, including v7x's 64 MiB physical budget).
    if n_tile is None:
        n_tile = 512 if N > 512 else _round_up(N, 8)
    N_TILE = _round_up(min(n_tile, _round_up(N, 8)), 8)
    NP = _round_up(N, N_TILE)
    num_n = NP // N_TILE

    if e_tile is None:
        e_tile = 1024 if E > 1024 else _round_up(max(E, 1), 128)
    E_TILE = _round_up(max(e_tile, 128), 128)

    src = jnp.asarray(edge_index[0], jnp.int32)
    dst = jnp.asarray(edge_index[1], jnp.int32)

    # ---- host-side CSR grouping of edges by destination node tile ----------
    dst_np = np.asarray(dst)
    gid = dst_np // N_TILE                              # group id per edge
    order = np.argsort(gid, kind="stable")
    counts = np.bincount(gid, minlength=num_n)[:num_n]
    tiles = -(-counts // E_TILE)                        # ceil; 0 for empty groups
    tile_offs = np.concatenate([[0], np.cumsum(tiles)])[:num_n]
    total_tiles = max(int(tiles.sum()), 1)
    max_tiles = max(int(tiles.max()) if tiles.size else 1, 1)
    EP = total_tiles * E_TILE

    group_start = np.concatenate([[0], np.cumsum(counts)])[:num_n]
    gid_sorted = gid[order]
    rank = np.arange(E) - group_start[gid_sorted]
    slot = tile_offs[gid_sorted] * E_TILE + rank        # grouped slot per edge

    dst_grouped = np.full((EP,), NP, np.int32)          # sentinel: never matches
    dst_grouped[slot] = dst_np[order]

    order_j = jnp.asarray(order, jnp.int32)
    slot_j = jnp.asarray(slot, jnp.int32)

    # Per-edge gate inputs (gather + concat), grouped, lane-padded, bf16.
    z_edges = jnp.concatenate(
        [x[dst[order_j]], x[src[order_j]], edge_attr[order_j]], axis=-1)
    z_edges = jnp.pad(z_edges, ((0, 0), (0, KP - K))).astype(jnp.bfloat16)
    z = jnp.zeros((EP, KP), jnp.bfloat16).at[slot_j].set(z_edges)

    dst_row = jnp.asarray(dst_grouped.reshape(1, EP))
    x_pad = jnp.pad(x, ((0, NP - N), (0, FP - F))).astype(jnp.float32)

    # Fused, zero-padded parameters.  Padded bias lanes get -1e9 so both the
    # sigmoid gate and the softplus are (exactly) 0 on padded feature lanes,
    # i.e. msg == 0 there (review correctness concern).
    w_fs = jnp.zeros((KP, 2 * FP), jnp.float32)
    w_fs = w_fs.at[:K, :F].set(params["wf"].T).at[:K, FP:FP + F].set(params["ws"].T)
    w_fs = w_fs.astype(jnp.bfloat16)
    b_fs = jnp.full((1, 2 * FP), -1e9, jnp.float32)
    b_fs = b_fs.at[0, :F].set(params["bf"]).at[0, FP:FP + F].set(params["bs"])
    w1 = jnp.zeros((FP, FP), jnp.float32).at[:F, :F].set(params["w1"].T)
    b1 = jnp.zeros((1, FP), jnp.float32).at[0, :F].set(params["b1"])

    offs_sm = jnp.asarray(tile_offs, jnp.int32)
    tiles_sm = jnp.asarray(tiles, jnp.int32)
    last_tile = total_tiles - 1

    # Data-dependent edge-tile index: within the group it walks offs[n] + e;
    # past the group's last tile it clamps (so the block index stops changing
    # and no extra DMA is issued), and it never leaves [0, total_tiles).
    def _tile_idx(n, e, offs, tls):
        last_of_group = jnp.maximum(tls[n] - 1, 0)
        return jnp.minimum(offs[n] + jnp.minimum(e, last_of_group), last_tile)

    def edge_map(n, e, offs, tls):
        return (_tile_idx(n, e, offs, tls), 0)

    def dst_map(n, e, offs, tls):
        return (0, _tile_idx(n, e, offs, tls))

    cost = pl.CostEstimate(
        flops=int(2 * EP * KP * 2 * FP          # fused gate matmul (once/edge)
                  + 2 * EP * N_TILE * FP        # one-hot scatter matmul
                  + 2 * NP * FP * FP),          # MLP
        transcendentals=int(3 * EP * FP),
        bytes_accessed=int(2 * EP * KP + 4 * EP + 2 * 4 * NP * FP
                           + 2 * KP * 2 * FP + 4 * FP * FP + 4 * 3 * FP),
    )

    out = pl.pallas_call(
        _cgconv_block_kernel,
        out_shape=jax.ShapeDtypeStruct((NP, FP), jnp.float32),
        grid_spec=pltpu.PrefetchScalarGridSpec(
            num_scalar_prefetch=2,
            grid=(num_n, max_tiles),
            in_specs=[
                pl.BlockSpec((1, E_TILE), dst_map),                       # dst ids
                pl.BlockSpec((E_TILE, KP), edge_map),                     # z (bf16)
                pl.BlockSpec((N_TILE, FP), lambda n, e, o, t: (n, 0)),    # x
                pl.BlockSpec((KP, 2 * FP), lambda n, e, o, t: (0, 0)),    # W_fs
                pl.BlockSpec((1, 2 * FP), lambda n, e, o, t: (0, 0)),     # b_fs
                pl.BlockSpec((FP, FP), lambda n, e, o, t: (0, 0)),        # W1
                pl.BlockSpec((1, FP), lambda n, e, o, t: (0, 0)),         # b1
            ],
            out_specs=pl.BlockSpec((N_TILE, FP), lambda n, e, o, t: (n, 0)),
            scratch_shapes=[pltpu.VMEM((N_TILE, FP), jnp.float32)],
        ),
        compiler_params=pltpu.CompilerParams(
            dimension_semantics=("parallel", "arbitrary")),
        cost_estimate=cost,
    )(offs_sm, tiles_sm, dst_row, z, x_pad, w_fs, b_fs, w1, b1)

    return out[:N, :F]


def _reference(x, edge_index, edge_attr, params):
    src, dst = edge_index[0], edge_index[1]
    z = jnp.concatenate([x[dst], x[src], edge_attr], axis=-1)
    f = z @ params["wf"].T + params["bf"]
    s = z @ params["ws"].T + params["bs"]
    msg = jax.nn.sigmoid(f) * jax.nn.softplus(s)
    agg = jnp.zeros_like(x).at[dst].add(msg)
    conv_out = x + agg
    return jax.nn.relu(conv_out @ params["w1"].T + params["b1"])


def _init_params(key, F, D):
    ks = jax.random.split(key, 6)
    zdim = 2 * F + D
    u = lambda k, shape, fan_in: jax.random.uniform(
        k, shape, jnp.float32, -1.0 / jnp.sqrt(fan_in), 1.0 / jnp.sqrt(fan_in))
    return {
        "wf": u(ks[0], (F, zdim), zdim),   # CGConv lin_f
        "bf": u(ks[1], (F,), zdim),
        "ws": u(ks[2], (F, zdim), zdim),   # CGConv lin_s
        "bs": u(ks[3], (F,), zdim),
        "w1": u(ks[4], (F, F), F),         # MLP Linear
        "b1": u(ks[5], (F,), F),
    }


def _run_case(key, N, F, D, E, **tile_kwargs):
    k_x, k_e, k_ei, k_p = jax.random.split(key, 4)
    x = jax.random.normal(k_x, (N, F), dtype=jnp.float32)
    edge_attr = jax.random.normal(k_e, (E, D), dtype=jnp.float32)
    edge_index = jax.random.randint(k_ei, (2, E), 0, N, dtype=jnp.int32)
    params = _init_params(k_p, F, D)

    out = cgconv_block(x, edge_index, edge_attr, params, **tile_kwargs)
    out = jax.block_until_ready(out)

    ref = _reference(x, edge_index, edge_attr, params)
    assert out.shape == (N, F)
    # Tolerance loosened vs an exact f32 path: bf16 MXU operands on the
    # gate / scatter path (per perf review) + approx EUP reciprocal sigmoid.
    assert jnp.allclose(out, ref, atol=2e-2, rtol=2e-2), "mismatch vs reference"


if __name__ == "__main__":
    key = jax.random.PRNGKey(0)
    k1, k2 = jax.random.split(key)

    # Small demo shapes (single node tile, single edge tile).
    _run_case(k1, N=8, F=16, D=8, E=24)

    # Larger case exercising the CSR grouping path: 5 node tiles, multiple
    # edge tiles per destination group, scalar-prefetched per-group offsets.
    _run_case(k2, N=300, F=16, D=8, E=1024, n_tile=64, e_tile=128)

    print("KERNEL_OK")
</pallas_src>

<mosaic_0001>
module attributes {stable_mosaic.version = 11 : i64} {
  func.func @_cgconv_block_kernel(%arg0: i32, %arg1: i32, %arg2: memref<1xi32, #tpu.memory_space<smem>>, %arg3: memref<1xi32, #tpu.memory_space<smem>>, %arg4: memref<1x128xi32, #tpu.memory_space<vmem>>, %arg5: memref<128x128xbf16, #tpu.memory_space<vmem>>, %arg6: memref<8x128xf32, #tpu.memory_space<vmem>>, %arg7: memref<128x256xbf16, #tpu.memory_space<vmem>>, %arg8: memref<1x256xf32, #tpu.memory_space<vmem>>, %arg9: memref<128x128xf32, #tpu.memory_space<vmem>>, %arg10: memref<1x128xf32, #tpu.memory_space<vmem>>, %arg11: memref<8x128xf32, #tpu.memory_space<vmem>>, %arg12: memref<8x128xf32, #tpu.memory_space<vmem>>) attributes {dimension_semantics = [#tpu.dimension_semantics<parallel>, #tpu.dimension_semantics<arbitrary>], iteration_bounds = array<i64: 1, 1>, scalar_prefetch = 2 : i64, scratch_operands = 1 : i64, tpu.core_type = #tpu.core_type<tc>, window_params = [{transform_indices = @transform_0, window_bounds = array<i64: 1, 128>}, {transform_indices = @transform_1, window_bounds = array<i64: 128, 128>}, {transform_indices = @transform_2, window_bounds = array<i64: 8, 128>}, {pipeline_mode = #tpu.pipeline_mode<synchronous>, transform_indices = @transform_3, window_bounds = array<i64: 128, 256>}, {pipeline_mode = #tpu.pipeline_mode<synchronous>, transform_indices = @transform_4, window_bounds = array<i64: 1, 256>}, {pipeline_mode = #tpu.pipeline_mode<synchronous>, transform_indices = @transform_5, window_bounds = array<i64: 128, 128>}, {pipeline_mode = #tpu.pipeline_mode<synchronous>, transform_indices = @transform_6, window_bounds = array<i64: 1, 128>}, {transform_indices = @transform_7, window_bounds = array<i64: 8, 128>}]} {
    %c0_i32 = arith.constant 0 : i32
    %0 = arith.cmpi eq, %arg1, %c0_i32 : i32
    %1 = arith.extui %0 : i1 to i32
    %c0_i32_0 = arith.constant 0 : i32
    %2 = arith.cmpi ne, %1, %c0_i32_0 : i32
    scf.if %2 {
      %cst = arith.constant 0.000000e+00 : f32
      %11 = vector.broadcast %cst : f32 to vector<8x128xf32>
      %c0 = arith.constant 0 : index
      %c0_4 = arith.constant 0 : index
      %12 = vector.load %arg12[%c0, %c0_4] : memref<8x128xf32, #tpu.memory_space<vmem>>, vector<8x128xf32>
      tpu.vector_store %arg12[%c0, %c0_4], %11 {strides = array<i32>} : memref<8x128xf32, #tpu.memory_space<vmem>>, vector<8x128xf32>,
    } else {
    }
    %3 = arith.index_cast %arg0 : i32 to index
    %4 = memref.load %arg3[%3] : memref<1xi32, #tpu.memory_space<smem>>
    %5 = arith.cmpi slt, %arg1, %4 : i32
    %6 = arith.extui %5 : i1 to i32
    %c0_i32_1 = arith.constant 0 : i32
    %7 = arith.cmpi ne, %6, %c0_i32_1 : i32
    scf.if %7 {
      %c0 = arith.constant 0 : index
      %c0_4 = arith.constant 0 : index
      %11 = vector.load %arg5[%c0, %c0_4] : memref<128x128xbf16, #tpu.memory_space<vmem>>, vector<128x128xbf16>
      %c0_5 = arith.constant 0 : index
      %c0_6 = arith.constant 0 : index
      %12 = vector.load %arg7[%c0_5, %c0_6] : memref<128x256xbf16, #tpu.memory_space<vmem>>, vector<128x256xbf16>
      %cst = arith.constant dense<0.000000e+00> : vector<128x256xf32>
      %13 = tpu.matmul %11, %12, %cst {dimension_numbers = #tpu.dot_dimension_numbers<[1], [0], [0], [1], [0, 0, 1, 1], [], []>} : vector<128x128xbf16>, vector<128x256xbf16>, vector<128x256xf32> -> vector<128x256xf32>
      %c0_7 = arith.constant 0 : index
      %c0_8 = arith.constant 0 : index
      %14 = vector.load %arg8[%c0_7, %c0_8] : memref<1x256xf32, #tpu.memory_space<vmem>>, vector<1x256xf32>
      %15 = vector.broadcast %14 : vector<1x256xf32> to vector<128x256xf32>
      %16 = arith.addf %13, %15 : vector<128x256xf32>
      %17 = vector.extract_strided_slice %16 {offsets = [0, 0], sizes = [128, 128], strides = [1, 1]} : vector<128x256xf32> to vector<128x128xf32>
      %18 = vector.extract_strided_slice %16 {offsets = [0, 128], sizes = [128, 128], strides = [1, 1]} : vector<128x256xf32> to vector<128x128xf32>
      %cst_9 = arith.constant 0.000000e+00 : f32
      %19 = vector.broadcast %cst_9 : f32 to vector<128x128xf32>
      %20 = arith.subf %19, %17 : vector<128x128xf32>
      %cst_10 = arith.constant 8.000000e+01 : f32
      %21 = vector.broadcast %cst_10 : f32 to vector<128x128xf32>
      %22 = arith.minimumf %20, %21 : vector<128x128xf32>
      %23 = math.exp %22 : vector<128x128xf32>
      %cst_11 = arith.constant 1.000000e+00 : f32
      %24 = vector.broadcast %cst_11 : f32 to vector<128x128xf32>
      %25 = arith.addf %24, %23 : vector<128x128xf32>
      %26 = tpu.reciprocal %25 {approx = true} : vector<128x128xf32> -> vector<128x128xf32>
      %cst_12 = arith.constant 2.000000e+01 : f32
      %27 = vector.broadcast %cst_12 : f32 to vector<128x128xf32>
      %28 = arith.cmpf ogt, %18, %27 : vector<128x128xf32>
      %cst_13 = arith.constant 2.000000e+01 : f32
      %29 = vector.broadcast %cst_13 : f32 to vector<128x128xf32>
      %30 = arith.minimumf %18, %29 : vector<128x128xf32>
      %31 = math.exp %30 : vector<128x128xf32>
      %cst_14 = arith.constant 1.000000e+00 : f32
      %32 = vector.broadcast %cst_14 : f32 to vector<128x128xf32>
      %33 = arith.addf %32, %31 : vector<128x128xf32>
      %34 = math.log %33 : vector<128x128xf32>
      %35 = arith.select %28, %18, %34 : vector<128x128xi1>, vector<128x128xf32>
      %36 = arith.mulf %26, %35 : vector<128x128xf32>
      %37 = arith.truncf %36 : vector<128x128xf32> to vector<128x128xbf16>
      %c0_15 = arith.constant 0 : index
      %c0_16 = arith.constant 0 : index
      %38 = vector.load %arg4[%c0_15, %c0_16] : memref<1x128xi32, #tpu.memory_space<vmem>>, vector<1x128xi32>
      %c8_i32 = arith.constant 8 : i32
      %39 = arith.muli %arg0, %c8_i32 : i32
      %40 = vector.broadcast %39 : i32 to vector<1x128xi32>
      %41 = arith.subi %38, %40 : vector<1x128xi32>
      %42 = tpu.iota {dimensions = array<i32: 0>} : vector<8x128xi32>
      %43 = vector.broadcast %41 : vector<1x128xi32> to vector<8x128xi32>
      %44 = arith.cmpi eq, %42, %43 : vector<8x128xi32>
      %45 = arith.extui %44 : vector<8x128xi1> to vector<8x128xi32>
      %46 = arith.sitofp %45 : vector<8x128xi32> to vector<8x128xf32>
      %47 = arith.truncf %46 : vector<8x128xf32> to vector<8x128xbf16>
      %c0_17 = arith.constant 0 : index
      %c0_18 = arith.constant 0 : index
      %48 = vector.load %arg12[%c0_17, %c0_18] : memref<8x128xf32, #tpu.memory_space<vmem>>, vector<8x128xf32>
      %cst_19 = arith.constant dense<0.000000e+00> : vector<8x128xf32>
      %49 = tpu.matmul %47, %37, %cst_19 {dimension_numbers = #tpu.dot_dimension_numbers<[1], [0], [0], [1], [0, 0, 1, 1], [], []>} : vector<8x128xbf16>, vector<128x128xbf16>, vector<8x128xf32> -> vector<8x128xf32>
      %50 = arith.addf %48, %49 : vector<8x128xf32>
      %c0_20 = arith.constant 0 : index
      %c0_21 = arith.constant 0 : index
      %51 = vector.load %arg12[%c0_20, %c0_21] : memref<8x128xf32, #tpu.memory_space<vmem>>, vector<8x128xf32>
      tpu.vector_store %arg12[%c0_20, %c0_21], %50 {strides = array<i32>} : memref<8x128xf32, #tpu.memory_space<vmem>>, vector<8x128xf32>,
    } else {
    }
    %c0_i32_2 = arith.constant 0 : i32
    %8 = arith.cmpi eq, %arg1, %c0_i32_2 : i32
    %9 = arith.extui %8 : i1 to i32
    %c0_i32_3 = arith.constant 0 : i32
    %10 = arith.cmpi ne, %9, %c0_i32_3 : i32
    scf.if %10 {
      %c0 = arith.constant 0 : index
      %c0_4 = arith.constant 0 : index
      %11 = vector.load %arg6[%c0, %c0_4] : memref<8x128xf32, #tpu.memory_space<vmem>>, vector<8x128xf32>
      %c0_5 = arith.constant 0 : index
      %c0_6 = arith.constant 0 : index
      %12 = vector.load %arg12[%c0_5, %c0_6] : memref<8x128xf32, #tpu.memory_space<vmem>>, vector<8x128xf32>
      %13 = arith.addf %11, %12 : vector<8x128xf32>
      %c0_7 = arith.constant 0 : index
      %c0_8 = arith.constant 0 : index
      %14 = vector.load %arg9[%c0_7, %c0_8] : memref<128x128xf32, #tpu.memory_space<vmem>>, vector<128x128xf32>
      %cst = arith.constant dense<0.000000e+00> : vector<8x128xf32>
      %15 = tpu.matmul %13, %14, %cst {dimension_numbers = #tpu.dot_dimension_numbers<[1], [0], [0], [1], [0, 0, 1, 1], [], []>} : vector<8x128xf32>, vector<128x128xf32>, vector<8x128xf32> -> vector<8x128xf32>
      %c0_9 = arith.constant 0 : index
      %c0_10 = arith.constant 0 : index
      %16 = vector.load %arg10[%c0_9, %c0_10] : memref<1x128xf32, #tpu.memory_space<vmem>>, vector<1x128xf32>
      %17 = vector.broadcast %16 : vector<1x128xf32> to vector<8x128xf32>
      %18 = arith.addf %15, %17 : vector<8x128xf32>
      %cst_11 = arith.constant 0.000000e+00 : f32
      %19 = vector.broadcast %cst_11 : f32 to vector<8x128xf32>
      %20 = arith.maximumf %18, %19 : vector<8x128xf32>
      %c0_12 = arith.constant 0 : index
      %c0_13 = arith.constant 0 : index
      %21 = vector.load %arg11[%c0_12, %c0_13] : memref<8x128xf32, #tpu.memory_space<vmem>>, vector<8x128xf32>
      tpu.vector_store %arg11[%c0_12, %c0_13], %20 {strides = array<i32>} : memref<8x128xf32, #tpu.memory_space<vmem>>, vector<8x128xf32>,
    } else {
    }
    return
  }
  func.func @transform_0(%arg0: i32, %arg1: i32, %arg2: memref<1xi32, #tpu.memory_space<smem>>, %arg3: memref<1xi32, #tpu.memory_space<smem>>) -> (i32, i32) {
    %0 = arith.index_cast %arg0 : i32 to index
    %1 = memref.load %arg3[%0] : memref<1xi32, #tpu.memory_space<smem>>
    %c1_i32 = arith.constant 1 : i32
    %2 = arith.subi %1, %c1_i32 : i32
    %c0_i32 = arith.constant 0 : i32
    %3 = arith.maxsi %2, %c0_i32 : i32
    %4 = arith.index_cast %arg0 : i32 to index
    %5 = memref.load %arg2[%4] : memref<1xi32, #tpu.memory_space<smem>>
    %6 = arith.minsi %arg1, %3 : i32
    %7 = arith.addi %5, %6 : i32
    %c0_i32_0 = arith.constant 0 : i32
    %8 = arith.minsi %7, %c0_i32_0 : i32
    %c0_i32_1 = arith.constant 0 : i32
    %c0_i32_2 = arith.constant 0 : i32
    return %c0_i32_1, %8 : i32, i32
  }
  func.func @transform_1(%arg0: i32, %arg1: i32, %arg2: memref<1xi32, #tpu.memory_space<smem>>, %arg3: memref<1xi32, #tpu.memory_space<smem>>) -> (i32, i32) {
    %0 = arith.index_cast %arg0 : i32 to index
    %1 = memref.load %arg3[%0] : memref<1xi32, #tpu.memory_space<smem>>
    %c1_i32 = arith.constant 1 : i32
    %2 = arith.subi %1, %c1_i32 : i32
    %c0_i32 = arith.constant 0 : i32
    %3 = arith.maxsi %2, %c0_i32 : i32
    %4 = arith.index_cast %arg0 : i32 to index
    %5 = memref.load %arg2[%4] : memref<1xi32, #tpu.memory_space<smem>>
    %6 = arith.minsi %arg1, %3 : i32
    %7 = arith.addi %5, %6 : i32
    %c0_i32_0 = arith.constant 0 : i32
    %8 = arith.minsi %7, %c0_i32_0 : i32
    %c0_i32_1 = arith.constant 0 : i32
    %c0_i32_2 = arith.constant 0 : i32
    return %8, %c0_i32_1 : i32, i32
  }
  func.func @transform_2(%arg0: i32, %arg1: i32, %arg2: memref<1xi32, #tpu.memory_space<smem>>, %arg3: memref<1xi32, #tpu.memory_space<smem>>) -> (i32, i32) {
    %c0_i32 = arith.constant 0 : i32
    %c0_i32_0 = arith.constant 0 : i32
    return %arg0, %c0_i32 : i32, i32
  }
  func.func @transform_3(%arg0: i32, %arg1: i32, %arg2: memref<1xi32, #tpu.memory_space<smem>>, %arg3: memref<1xi32, #tpu.memory_space<smem>>) -> (i32, i32) {
    %c0_i32 = arith.constant 0 : i32
    %c0_i32_0 = arith.constant 0 : i32
    %c0_i32_1 = arith.constant 0 : i32
    return %c0_i32, %c0_i32_0 : i32, i32
  }
  func.func @transform_4(%arg0: i32, %arg1: i32, %arg2: memref<1xi32, #tpu.memory_space<smem>>, %arg3: memref<1xi32, #tpu.memory_space<smem>>) -> (i32, i32) {
    %c0_i32 = arith.constant 0 : i32
    %c0_i32_0 = arith.constant 0 : i32
    %c0_i32_1 = arith.constant 0 : i32
    return %c0_i32, %c0_i32_0 : i32, i32
  }
  func.func @transform_5(%arg0: i32, %arg1: i32, %arg2: memref<1xi32, #tpu.memory_space<smem>>, %arg3: memref<1xi32, #tpu.memory_space<smem>>) -> (i32, i32) {
    %c0_i32 = arith.constant 0 : i32
    %c0_i32_0 = arith.constant 0 : i32
    %c0_i32_1 = arith.constant 0 : i32
    return %c0_i32, %c0_i32_0 : i32, i32
  }
  func.func @transform_6(%arg0: i32, %arg1: i32, %arg2: memref<1xi32, #tpu.memory_space<smem>>, %arg3: memref<1xi32, #tpu.memory_space<smem>>) -> (i32, i32) {
    %c0_i32 = arith.constant 0 : i32
    %c0_i32_0 = arith.constant 0 : i32
    %c0_i32_1 = arith.constant 0 : i32
    return %c0_i32, %c0_i32_0 : i32, i32
  }
  func.func @transform_7(%arg0: i32, %arg1: i32, %arg2: memref<1xi32, #tpu.memory_space<smem>>, %arg3: memref<1xi32, #tpu.memory_space<smem>>) -> (i32, i32) {
    %c0_i32 = arith.constant 0 : i32
    %c0_i32_0 = arith.constant 0 : i32
    return %arg0, %c0_i32 : i32, i32
  }
}

</mosaic_0001>

<llo_original>
// kernel: tpu_custom_call.1
$region0: #{tpu_custom_call.1}
  #allocation0 [shape = 'u32[]', space=smem, size = 0x4, offset = 0x4, fixed_abs, tag = 'smem constant byte address 0x4 - core index']
  #allocation1 [shape = 'u32[144,128]{1,0:T(1,128)}', space=vmem, size = 0x12000, scoped, tag = 'internal scratch']
  #allocation2 [shape = 'f32[8,128]{1,0:T(8,128)}', space=vmem, size = 0x1000, scoped, tag = 'scratch operand']
  #allocation3 [shape = 's32[1]{0}', space=sflag, size = 0x4, scoped, tag = 'scoped memory for tpu_custom_call.1']
  #allocation4 [shape = 's32[1]{0:T(128)S(6)}', space=smem, size = 0x200, scoped, tag = 'prefetched SMEM operand 0']
  #allocation5 [shape = 's32[1]{0:T(128)S(6)}', space=smem, size = 0x200, scoped, tag = 'prefetched SMEM operand 1']
  %s0 = inlined_call_operand.<no memory space> [shape: s32[1], index: 0, kind: input, shape index: {}]
  %s1 = inlined_call_operand.<no memory space> [shape: s32[1], index: 1, kind: input, shape index: {}]
  %s2 = inlined_call_operand.vmem [shape: s32[1,128], index: 2, kind: input, shape index: {}]
  %s3 = inlined_call_operand.hbm [shape: bf16[128,128], index: 3, kind: input, shape index: {}]
  %s4 = inlined_call_operand.vmem [shape: f32[8,128], index: 4, kind: input, shape index: {}]
  %s5 = inlined_call_operand.hbm [shape: bf16[128,256], index: 5, kind: input, shape index: {}]
  %s6 = inlined_call_operand.vmem [shape: f32[1,256], index: 6, kind: input, shape index: {}]
  %s7 = inlined_call_operand.hbm [shape: f32[128,128], index: 7, kind: input, shape index: {}]
  %s8 = inlined_call_operand.vmem [shape: f32[1,128], index: 8, kind: input, shape index: {}]
  %s9 = inlined_call_operand.hbm [shape: f32[8,128], index: 9, kind: output, shape index: {}]
  %s10 = sld [smem:[#allocation0]]
  $region62: #{tpu_custom_call.1} parent=0
    _
  %s12 = ssub.s32 1, %s10
  %s13 = scalar_select 0, %s12, %s10
  %14 = sst [smem:[#allocation4]] %s0
  %15 = sst [smem:[#allocation5]] %s1
  $region1: #{tpu_custom_call.1} parent=0
    #allocation6 [shape = 'u8[32768]{0}', space=vmem, size = 0x8000, scoped, tag = 'input window, operand 3, single buffered']
    #allocation7 [shape = 's32[1]{0}', space=sflag, size = 0x4, scoped, tag = 'scoped memory for tpu_custom_call.1']
    #allocation8 [shape = 's32[1]{0}', space=sflag, size = 0x4, scoped, tag = 'scoped memory for tpu_custom_call.1']
    #allocation9 [shape = 'u8[65536]{0}', space=vmem, size = 0x10000, scoped, tag = 'input window, operand 5, single buffered']
    #allocation10 [shape = 's32[1]{0}', space=sflag, size = 0x4, scoped, tag = 'scoped memory for tpu_custom_call.1']
    #allocation11 [shape = 'u8[65536]{0}', space=vmem, size = 0x10000, scoped, tag = 'input window, operand 7, single buffered']
    #allocation12 [shape = 'u8[4096]{0}', space=vmem, size = 0x1000, scoped, tag = 'output window, operand 0, single buffered']
    %16 = vsyncpa [#allocation7], 0
    %17 = vsyncpa [#allocation10], 0
    %18 = vsyncpa [#allocation8], 0
    // Predicated region
    $region2: #{tpu_custom_call.1} parent=1 // pred_check
      _
    $region3: #{tpu_custom_call.1} parent=1 // pred_check_branch
      %20 = sbr.rel (0) target = $region5
    $region4: #{tpu_custom_call.1} parent=1 // pred_region
      %s21 = sld [smem:[#allocation5]]
      %s22 = ssub.s32 %s21, 1
      %p23 = scmp.gt.s32.totalorder %s22, 0
      %s24 = scalar_select %p23, %s22, 0
      %s25 = sld [smem:[#allocation4]]
      %p26 = scmp.lt.s32.totalorder 0, %s24
      %s27 = scalar_select %p26, 0, %s24
      %s28 = sadd.s32 %s25, %s27
      %p29 = scmp.lt.s32.totalorder %s28, 0
      %s30 = scalar_select %p29, %s28, 0
      %p31 = scmp.lt.s32.totalorder %s30, 0
      %s32 = scalar_select %p31, %s30, 0
      %s33 = scalar_lea.vmem %s2, %s32
      %s34 = sld [smem:[#allocation5]]
      %s35 = ssub.s32 %s34, 1
      %p36 = scmp.gt.s32.totalorder %s35, 0
      %s37 = scalar_select %p36, %s35, 0
      %s38 = sld [smem:[#allocation4]]
      %p39 = scmp.lt.s32.totalorder 0, %s37
      %s40 = scalar_select %p39, 0, %s37
      %s41 = sadd.s32 %s38, %s40
      %p42 = scmp.lt.s32.totalorder %s41, 0
      %s43 = scalar_select %p42, %s41, 0
    $region5: #{tpu_custom_call.1} parent=1 // pred_fallthru
      _
    // Predicated region
    $region6: #{tpu_custom_call.1} parent=1 // pred_check
      _
    $region7: #{tpu_custom_call.1} parent=1 // pred_check_branch
      %45 = sbr.rel (0) target = $region9
    $region8: #{tpu_custom_call.1} parent=1 // pred_region
      %s46 = sld [smem:[#allocation5]]
      %s47 = ssub.s32 %s46, 1
      %p48 = scmp.gt.s32.totalorder %s47, 0
      %s49 = scalar_select %p48, %s47, 0
      %s50 = sld [smem:[#allocation4]]
      %p51 = scmp.lt.s32.totalorder 0, %s49
      %s52 = scalar_select %p51, 0, %s49
      %s53 = sadd.s32 %s50, %s52
      %p54 = scmp.lt.s32.totalorder %s53, 0
      %s55 = scalar_select %p54, %s53, 0
      %s56 = smul.u32 16, %s55
      %s58 = ssub.s32 1024, 1024
      %59 = vsyncadd [#allocation7], %s58
      %s60 = smul.addr %s56, 64
      %s61 = scalar_lea.hbm %s3, %s60
      %s62 = sshll.u32 [#allocation6], 4
      %s63 = int_to_ptr.vmem [resolvable:$true] %s62
      %68 = dma.hbm_to_vmem [thread:$0]  %s61, 1024, %s63, [#allocation7], 64, 64, 4
    $region9: #{tpu_custom_call.1} parent=1 // pred_fallthru
      _
    // Predicated region
    $region10: #{tpu_custom_call.1} parent=1 // pred_check
      _
    $region11: #{tpu_custom_call.1} parent=1 // pred_check_branch
      %70 = sbr.rel (0) target = $region13
    $region12: #{tpu_custom_call.1} parent=1 // pred_region
      _
    $region13: #{tpu_custom_call.1} parent=1 // pred_fallthru
      _
    // Predicated region
    $region14: #{tpu_custom_call.1} parent=1 // pred_check
      _
    $region15: #{tpu_custom_call.1} parent=1 // pred_check_branch
      %72 = sbr.rel (0) target = $region17
    $region16: #{tpu_custom_call.1} parent=1 // pred_region
      %s74 = ssub.s32 2048, 2048
      %75 = vsyncadd [#allocation10], %s74
      %s76 = sshll.u32 [#allocation9], 4
      %s77 = int_to_ptr.vmem [resolvable:$true] %s76
      %82 = dma.hbm_to_vmem [thread:$0]  %s5, 2048, %s77, [#allocation10], 128, 128, 8
    $region17: #{tpu_custom_call.1} parent=1 // pred_fallthru
      _
    // Predicated region
    $region18: #{tpu_custom_call.1} parent=1 // pred_check
      _
    $region19: #{tpu_custom_call.1} parent=1 // pred_check_branch
      %84 = sbr.rel (0) target = $region21
    $region20: #{tpu_custom_call.1} parent=1 // pred_region
      _
    $region21: #{tpu_custom_call.1} parent=1 // pred_fallthru
      _
    // Predicated region
    $region22: #{tpu_custom_call.1} parent=1 // pred_check
      _
    $region23: #{tpu_custom_call.1} parent=1 // pred_check_branch
      %86 = sbr.rel (0) target = $region25
    $region24: #{tpu_custom_call.1} parent=1 // pred_region
      %s88 = ssub.s32 2048, 2048
      %89 = vsyncadd [#allocation10], %s88
      %s90 = sshll.u32 [#allocation11], 4
      %s91 = int_to_ptr.vmem [resolvable:$true] %s90
      %96 = dma.hbm_to_vmem [thread:$0]  %s7, 2048, %s91, [#allocation10], 128, 128, 8
    $region25: #{tpu_custom_call.1} parent=1 // pred_fallthru
      _
    // Predicated region
    $region26: #{tpu_custom_call.1} parent=1 // pred_check
      _
    $region27: #{tpu_custom_call.1} parent=1 // pred_check_branch
      %98 = sbr.rel (0) target = $region29
    $region28: #{tpu_custom_call.1} parent=1 // pred_region
      _
    $region29: #{tpu_custom_call.1} parent=1 // pred_fallthru
      _
    // Predicated region
    $region30: #{tpu_custom_call.1} parent=1 // pred_check
      _
    $region31: #{tpu_custom_call.1} parent=1 // pred_check_branch
      %100 = sbr.rel (0) target = $region33
    $region32: #{tpu_custom_call.1} parent=1 // pred_region
      %101 = dma.done [#allocation7], 1024
    $region33: #{tpu_custom_call.1} parent=1 // pred_fallthru
      _
    // Predicated region
    $region34: #{tpu_custom_call.1} parent=1 // pred_check
      _
    $region35: #{tpu_custom_call.1} parent=1 // pred_check_branch
      %103 = sbr.rel (0) target = $region37
    $region36: #{tpu_custom_call.1} parent=1 // pred_region
      %104 = dma.done [#allocation10], 2048
    $region37: #{tpu_custom_call.1} parent=1 // pred_fallthru
      _
    // Predicated region
    $region38: #{tpu_custom_call.1} parent=1 // pred_check
      _
    $region39: #{tpu_custom_call.1} parent=1 // pred_check_branch
      %106 = sbr.rel (0) target = $region41
    $region40: #{tpu_custom_call.1} parent=1 // pred_region
      %107 = dma.done [#allocation10], 2048
    $region41: #{tpu_custom_call.1} parent=1 // pred_fallthru
      _
    %s108 = sld [smem:[#allocation5]]
    %s109 = ssub.s32 %s108, 1
    %p110 = scmp.gt.s32.totalorder %s109, 0
    %s111 = scalar_select %p110, %s109, 0
    %s112 = sld [smem:[#allocation4]]
    %p113 = scmp.lt.s32.totalorder 0, %s111
    %s114 = scalar_select %p113, 0, %s111
    %s115 = sadd.s32 %s112, %s114
    %p116 = scmp.lt.s32.totalorder %s115, 0
    %s117 = scalar_select %p116, %s115, 0
    %p118 = scmp.lt.s32.totalorder %s117, 0
    %s119 = scalar_select %p118, %s117, 0
    %s120 = scalar_lea.vmem %s2, %s119
    %s121 = sld [smem:[#allocation5]]
    %s122 = ssub.s32 %s121, 1
    %p123 = scmp.gt.s32.totalorder %s122, 0
    %s124 = scalar_select %p123, %s122, 0
    %s125 = sld [smem:[#allocation4]]
    %p126 = scmp.lt.s32.totalorder 0, %s124
    %s127 = scalar_select %p126, 0, %s124
    %s128 = sadd.s32 %s125, %s127
    %p129 = scmp.lt.s32.totalorder %s128, 0
    %s130 = scalar_select %p129, %s128, 0
    %p131 = scmp.lt.s32.totalorder %s130, 0
    %s132 = scalar_select %p131, %s130, 0
    %s133 = scalar_lea.vmem %s2, %s132
    %s134 = sld [smem:[#allocation5]]
    %s135 = ssub.s32 %s134, 1
    %p136 = scmp.gt.s32.totalorder %s135, 0
    %s137 = scalar_select %p136, %s135, 0
    %s138 = sld [smem:[#allocation4]]
    %p139 = scmp.lt.s32.totalorder 0, %s137
    %s140 = scalar_select %p139, 0, %s137
    %s141 = sadd.s32 %s138, %s140
    %p142 = scmp.lt.s32.totalorder %s141, 0
    %s143 = scalar_select %p142, %s141, 0
    %s144 = sld [smem:[#allocation5]]
    %s145 = ssub.s32 %s144, 1
    %p146 = scmp.gt.s32.totalorder %s145, 0
    %s147 = scalar_select %p146, %s145, 0
    %s148 = sld [smem:[#allocation4]]
    %p149 = scmp.lt.s32.totalorder 0, %s147
    %s150 = scalar_select %p149, 0, %s147
    %s151 = sadd.s32 %s148, %s150
    %p152 = scmp.lt.s32.totalorder %s151, 0
    %s153 = scalar_select %p152, %s151, 0
    %s154 = smul.u32 16, %s153
    %p156 = scmp.eq.s32.totalorder 0, 0
    // Predicated region
    $region42: #{tpu_custom_call.1} parent=1 // pred_check
      %p157 = pneg %p156
    $region43: #{tpu_custom_call.1} parent=1 // pred_check_branch
      %159 = sbr.rel (%p157) target = $region45
    $region44: #{tpu_custom_call.1} parent=1 // pred_region
      %160 = vst [vmem:[#allocation2] sm:$0xff] 0.0
    $region45: #{tpu_custom_call.1} parent=1 // pred_fallthru
      _
    %s161 = sld [smem:[#allocation5]]
    %p162 = scmp.lt.s32.totalorder 0, %s161
    // Predicated region
    $region46: #{tpu_custom_call.1} parent=1 // pred_check
      %p163 = pneg %p162
    $region47: #{tpu_custom_call.1} parent=1 // pred_check_branch
      %165 = sbr.rel (%p163) target = $region49
    $region48: #{tpu_custom_call.1} parent=1 // pred_region
      %v166 = vld [vmem:[#allocation6] sm:$0xf]
      %v167 = vld [vmem:[#allocation6 + $0x4] sm:$0xf]
      %v168 = vld [vmem:[#allocation6 + $0x8] sm:$0xf]
      %v169 = vld [vmem:[#allocation6 + $0xc] sm:$0xf]
      %v170 = vld [vmem:[#allocation6 + $0x10] sm:$0xf]
      %v171 = vld [vmem:[#allocation6 + $0x14] sm:$0xf]
      %v172 = vld [vmem:[#allocation6 + $0x18] sm:$0xf]
      %v173 = vld [vmem:[#allocation6 + $0x1c] sm:$0xf]
      %v174 = vld [vmem:[#allocation6 + $0x20] sm:$0xf]
      %v175 = vld [vmem:[#allocation6 + $0x24] sm:$0xf]
      %v176 = vld [vmem:[#allocation6 + $0x28] sm:$0xf]
      %v177 = vld [vmem:[#allocation6 + $0x2c] sm:$0xf]
      %v178 = vld [vmem:[#allocation6 + $0x30] sm:$0xf]
      %v179 = vld [vmem:[#allocation6 + $0x34] sm:$0xf]
      %v180 = vld [vmem:[#allocation6 + $0x38] sm:$0xf]
      %v181 = vld [vmem:[#allocation6 + $0x3c] sm:$0xf]
      %v182 = vld [vmem:[#allocation9] sm:$0xff]
      %v183 = vld [vmem:[#allocation9 + $0x8] sm:$0xff]
      %v184 = vld [vmem:[#allocation9 + $0x10] sm:$0xff]
      %v185 = vld [vmem:[#allocation9 + $0x18] sm:$0xff]
      %v186 = vld [vmem:[#allocation9 + $0x20] sm:$0xff]
      %v187 = vld [vmem:[#allocation9 + $0x28] sm:$0xff]
      %v188 = vld [vmem:[#allocation9 + $0x30] sm:$0xff]
      %v189 = vld [vmem:[#allocation9 + $0x38] sm:$0xff]
      %v190 = vld [vmem:[#allocation9 + $0x40] sm:$0xff]
      %v191 = vld [vmem:[#allocation9 + $0x48] sm:$0xff]
      %v192 = vld [vmem:[#allocation9 + $0x50] sm:$0xff]
      %v193 = vld [vmem:[#allocation9 + $0x58] sm:$0xff]
      %v194 = vld [vmem:[#allocation9 + $0x60] sm:$0xff]
      %v195 = vld [vmem:[#allocation9 + $0x68] sm:$0xff]
      %v196 = vld [vmem:[#allocation9 + $0x70] sm:$0xff]
      %v197 = vld [vmem:[#allocation9 + $0x78] sm:$0xff]
      %v198 = vld [vmem:[%s6] sm:$0x3]
      %v200 = vlaneseq
      %v201 = vshrl.u32 %v200, 7
      %v202 = vsub.s32 0, %v201
      %v203 = vrot.slane %v198, %v202
      %v204 = vlaneseq
      %v205 = vshrl.u32 %v204, 7
      %v206 = vsub.s32 1, %v205
      %v207 = vrot.slane %v198, %v206
      %v226 = vunpack.c.l.b16 %v166
      %v227 = vunpack.c.l.b16 %v167
      %v228 = vunpack.c.l.b16 %v168
      %v229 = vunpack.c.l.b16 %v169
      %v230 = vunpack.c.l.b16 %v170
      %v231 = vunpack.c.l.b16 %v171
      %v232 = vunpack.c.l.b16 %v172
      %v233 = vunpack.c.l.b16 %v173
      %v234 = vunpack.c.l.b16 %v174
      %v235 = vunpack.c.l.b16 %v175
      %v236 = vunpack.c.l.b16 %v176
      %v237 = vunpack.c.l.b16 %v177
      %v238 = vunpack.c.l.b16 %v178
      %v239 = vunpack.c.l.b16 %v179
      %v240 = vunpack.c.l.b16 %v180
      %v241 = vunpack.c.l.b16 %v181
      %v242 = vpack.c.b16 %v227, %v226
      %v243 = vpack.c.b16 %v229, %v228
      %v244 = vpack.c.b16 %v231, %v230
      %v245 = vpack.c.b16 %v233, %v232
      %v246 = vpack.c.b16 %v235, %v234
      %v247 = vpack.c.b16 %v237, %v236
      %v248 = vpack.c.b16 %v239, %v238
      %v249 = vpack.c.b16 %v241, %v240
      %v274 = vunpack.c.l.b16 %v182
      %v275 = vunpack.c.h.b16 %v182
      %v276 = vunpack.c.l.b16 %v183
      %v277 = vunpack.c.h.b16 %v183
      %v278 = vunpack.c.l.b16 %v184
      %v279 = vunpack.c.h.b16 %v184
      %v280 = vunpack.c.l.b16 %v185
      %v281 = vunpack.c.h.b16 %v185
      %v282 = vunpack.c.l.b16 %v186
      %v283 = vunpack.c.h.b16 %v186
      %v284 = vunpack.c.l.b16 %v187
      %v285 = vunpack.c.h.b16 %v187
      %v286 = vunpack.c.l.b16 %v188
      %v287 = vunpack.c.h.b16 %v188
      %v288 = vunpack.c.l.b16 %v189
      %v289 = vunpack.c.h.b16 %v189
      %v290 = vunpack.c.l.b16 %v190
      %v291 = vunpack.c.h.b16 %v190
      %v292 = vunpack.c.l.b16 %v191
      %v293 = vunpack.c.h.b16 %v191
      %v294 = vunpack.c.l.b16 %v192
      %v295 = vunpack.c.h.b16 %v192
      %v296 = vunpack.c.l.b16 %v193
      %v297 = vunpack.c.h.b16 %v193
      %v298 = vunpack.c.l.b16 %v194
      %v299 = vunpack.c.h.b16 %v194
      %v300 = vunpack.c.l.b16 %v195
      %v301 = vunpack.c.h.b16 %v195
      %v302 = vunpack.c.l.b16 %v196
      %v303 = vunpack.c.h.b16 %v196
      %v304 = vunpack.c.l.b16 %v197
      %v305 = vunpack.c.h.b16 %v197
      %v306 = vpack.c.b16 %v276, %v274
      %v307 = vpack.c.b16 %v277, %v275
      %v308 = vpack.c.b16 %v280, %v278
      %v309 = vpack.c.b16 %v281, %v279
      %v310 = vpack.c.b16 %v284, %v282
      %v311 = vpack.c.b16 %v285, %v283
      %v312 = vpack.c.b16 %v288, %v286
      %v313 = vpack.c.b16 %v289, %v287
      %v314 = vpack.c.b16 %v292, %v290
      %v315 = vpack.c.b16 %v293, %v291
      %v316 = vpack.c.b16 %v296, %v294
      %v317 = vpack.c.b16 %v297, %v295
      %v318 = vpack.c.b16 %v300, %v298
      %v319 = vpack.c.b16 %v301, %v299
      %v320 = vpack.c.b16 %v304, %v302
      %v321 = vpack.c.b16 %v305, %v303
      %338 = vmatprep.subr.bf16.mxu0 %v307
      %339 = vmatpush1.bf16.msra.mxu0 %v306
      %340 = vmatprep.subr.bf16.mxu0 %v309
      %341 = vmatpush1.bf16.msra.mxu0 %v308
      %342 = vmatprep.subr.bf16.mxu0 %v311
      %343 = vmatpush1.bf16.msra.mxu0 %v310
      %344 = vmatprep.subr.bf16.mxu0 %v313
      %345 = vmatpush1.bf16.msra.mxu0 %v312
      %346 = vmatprep.subr.bf16.mxu0 %v315
      %347 = vmatpush1.bf16.msra.mxu0 %v314
      %348 = vmatprep.subr.bf16.mxu0 %v317
      %349 = vmatpush1.bf16.msra.mxu0 %v316
      %350 = vmatprep.subr.bf16.mxu0 %v319
      %351 = vmatpush1.bf16.msra.mxu0 %v318
      %352 = vmatprep.subr.bf16.mxu0 %v321
      %353 = vmatpush1.bf16.msra.mxu0 %v320
      %354 = vmatprep.subr.bf16.mxu0 0
      %355 = vmatpush1.bf16.msra.mxu0 0
      %356 = vmatprep.subr.bf16.mxu0 0
      %357 = vmatpush1.bf16.msra.mxu0 0
      %358 = vmatprep.subr.bf16.mxu0 0
      %359 = vmatpush1.bf16.msra.mxu0 0
      %360 = vmatprep.subr.bf16.mxu0 0
      %361 = vmatpush1.bf16.msra.mxu0 0
      %362 = vmatprep.subr.bf16.mxu0 0
      %363 = vmatpush1.bf16.msra.mxu0 0
      %364 = vmatprep.subr.bf16.mxu0 0
      %365 = vmatpush1.bf16.msra.mxu0 0
      %366 = vmatprep.subr.bf16.mxu0 0
      %367 = vmatpush1.bf16.msra.mxu0 0
      %368 = vmatprep.subr.bf16.mxu0 0
      %369 = vmatpush1.bf16.msra.mxu0 0
      %370 = vmatprep.mubr.bf16.mxu0 0
      %371 = vmatmul.mubr.bf16.gmra.mrb[0].mxu0 %v242
      %v372 = vpop.f32.mrb[0].mxu0
      %v373 = vadd.f32 %v203, %v372
      %v374 = vpop.f32.mrb[0].mxu0
      %v375 = vadd.f32 %v207, %v374
      %v376 = vpop.f32.mrb[0].mxu0
      %v377 = vadd.f32 %v203, %v376
      %v378 = vpop.f32.mrb[0].mxu0
      %v379 = vadd.f32 %v207, %v378
      %380 = vmatprep.mubr.bf16.mxu0 0
      %381 = vmatmul.mubr.bf16.gmra.mrb[0].mxu0 %v243
      %v382 = vpop.f32.mrb[0].mxu0
      %v383 = vadd.f32 %v203, %v382
      %v384 = vpop.f32.mrb[0].mxu0
      %v385 = vadd.f32 %v207, %v384
      %v386 = vpop.f32.mrb[0].mxu0
      %v387 = vadd.f32 %v203, %v386
      %v388 = vpop.f32.mrb[0].mxu0
      %v389 = vadd.f32 %v207, %v388
      %390 = vmatprep.mubr.bf16.mxu0 0
      %391 = vmatmul.mubr.bf16.gmra.mrb[0].mxu0 %v244
      %v392 = vpop.f32.mrb[0].mxu0
      %v393 = vadd.f32 %v203, %v392
      %v394 = vpop.f32.mrb[0].mxu0
      %v395 = vadd.f32 %v207, %v394
      %v396 = vpop.f32.mrb[0].mxu0
      %v397 = vadd.f32 %v203, %v396
      %v398 = vpop.f32.mrb[0].mxu0
      %v399 = vadd.f32 %v207, %v398
      %400 = vmatprep.mubr.bf16.mxu0 0
      %401 = vmatmul.mubr.bf16.gmra.mrb[0].mxu0 %v245
      %v402 = vpop.f32.mrb[0].mxu0
      %v403 = vadd.f32 %v203, %v402
      %v404 = vpop.f32.mrb[0].mxu0
      %v405 = vadd.f32 %v207, %v404
      %v406 = vpop.f32.mrb[0].mxu0
      %v407 = vadd.f32 %v203, %v406
      %v408 = vpop.f32.mrb[0].mxu0
      %v409 = vadd.f32 %v207, %v408
      %410 = vmatprep.mubr.bf16.mxu0 0
      %411 = vmatmul.mubr.bf16.gmra.mrb[0].mxu0 %v246
      %v412 = vpop.f32.mrb[0].mxu0
      %v413 = vadd.f32 %v203, %v412
      %v414 = vpop.f32.mrb[0].mxu0
      %v415 = vadd.f32 %v207, %v414
      %v416 = vpop.f32.mrb[0].mxu0
      %v417 = vadd.f32 %v203, %v416
      %v418 = vpop.f32.mrb[0].mxu0
      %v419 = vadd.f32 %v207, %v418
      %420 = vmatprep.mubr.bf16.mxu0 0
      %421 = vmatmul.mubr.bf16.gmra.mrb[0].mxu0 %v247
      %v422 = vpop.f32.mrb[0].mxu0
      %v423 = vadd.f32 %v203, %v422
      %v424 = vpop.f32.mrb[0].mxu0
      %v425 = vadd.f32 %v207, %v424
      %v426 = vpop.f32.mrb[0].mxu0
      %v427 = vadd.f32 %v203, %v426
      %v428 = vpop.f32.mrb[0].mxu0
      %v429 = vadd.f32 %v207, %v428
      %430 = vmatprep.mubr.bf16.mxu0 0
      %431 = vmatmul.mubr.bf16.gmra.mrb[0].mxu0 %v248
      %v432 = vpop.f32.mrb[0].mxu0
      %v433 = vadd.f32 %v203, %v432
      %v434 = vpop.f32.mrb[0].mxu0
      %v435 = vadd.f32 %v207, %v434
      %v436 = vpop.f32.mrb[0].mxu0
      %v437 = vadd.f32 %v203, %v436
      %v438 = vpop.f32.mrb[0].mxu0
      %v439 = vadd.f32 %v207, %v438
      %440 = vmatprep.mubr.bf16.mxu0 0
      %441 = vmatmul.mubr.bf16.gmra.mrb[0].mxu0 %v249
      %v442 = vpop.f32.mrb[0].mxu0
      %v443 = vadd.f32 %v203, %v442
      %v444 = vpop.f32.mrb[0].mxu0
      %v445 = vadd.f32 %v207, %v444
      %v446 = vpop.f32.mrb[0].mxu0
      %v447 = vadd.f32 %v203, %v446
      %v448 = vpop.f32.mrb[0].mxu0
      %v449 = vadd.f32 %v207, %v448
      %450 = vdwg.mxu0
      %v451 = vsub.f32 0.0, %v373
      %v452 = vsub.f32 0.0, %v377
      %v453 = vsub.f32 0.0, %v383
      %v454 = vsub.f32 0.0, %v387
      %v455 = vsub.f32 0.0, %v393
      %v456 = vsub.f32 0.0, %v397
      %v457 = vsub.f32 0.0, %v403
      %v458 = vsub.f32 0.0, %v407
      %v459 = vsub.f32 0.0, %v413
      %v460 = vsub.f32 0.0, %v417
      %v461 = vsub.f32 0.0, %v423
      %v462 = vsub.f32 0.0, %v427
      %v463 = vsub.f32 0.0, %v433
      %v464 = vsub.f32 0.0, %v437
      %v465 = vsub.f32 0.0, %v443
      %v466 = vsub.f32 0.0, %v447
      %v467 = vmin.f32 %v451, 80.0
      %v468 = vmin.f32 %v452, 80.0
      %v469 = vmin.f32 %v453, 80.0
      %v470 = vmin.f32 %v454, 80.0
      %v471 = vmin.f32 %v455, 80.0
      %v472 = vmin.f32 %v456, 80.0
      %v473 = vmin.f32 %v457, 80.0
      %v474 = vmin.f32 %v458, 80.0
      %v475 = vmin.f32 %v459, 80.0
      %v476 = vmin.f32 %v460, 80.0
      %v477 = vmin.f32 %v461, 80.0
      %v478 = vmin.f32 %v462, 80.0
      %v479 = vmin.f32 %v463, 80.0
      %v480 = vmin.f32 %v464, 80.0
      %v481 = vmin.f32 %v465, 80.0
      %v482 = vmin.f32 %v466, 80.0
      %v483 = vmul.f32 %v467, 1.442695
      %v484 = vpow.pop %v483
      %v485 = vmul.f32 %v468, 1.442695
      %v486 = vpow.pop %v485
      %v487 = vmul.f32 %v469, 1.442695
      %v488 = vpow.pop %v487
      %v489 = vmul.f32 %v470, 1.442695
      %v490 = vpow.pop %v489
      %v491 = vmul.f32 %v471, 1.442695
      %v492 = vpow.pop %v491
      %v493 = vmul.f32 %v472, 1.442695
      %v494 = vpow.pop %v493
      %v495 = vmul.f32 %v473, 1.442695
      %v496 = vpow.pop %v495
      %v497 = vmul.f32 %v474, 1.442695
      %v498 = vpow.pop %v497
      %v499 = vmul.f32 %v475, 1.442695
      %v500 = vpow.pop %v499
      %v501 = vmul.f32 %v476, 1.442695
      %v502 = vpow.pop %v501
      %v503 = vmul.f32 %v477, 1.442695
      %v504 = vpow.pop %v503
      %v505 = vmul.f32 %v478, 1.442695
      %v506 = vpow.pop %v505
      %v507 = vmul.f32 %v479, 1.442695
      %v508 = vpow.pop %v507
      %v509 = vmul.f32 %v480, 1.442695
      %v510 = vpow.pop %v509
      %v511 = vmul.f32 %v481, 1.442695
      %v512 = vpow.pop %v511
      %v513 = vmul.f32 %v482, 1.442695
      %v514 = vpow.pop %v513
      %v515 = vadd.f32 %v484, 1.0
      %v516 = vadd.f32 %v486, 1.0
      %v517 = vadd.f32 %v488, 1.0
      %v518 = vadd.f32 %v490, 1.0
      %v519 = vadd.f32 %v492, 1.0
      %v520 = vadd.f32 %v494, 1.0
      %v521 = vadd.f32 %v496, 1.0
      %v522 = vadd.f32 %v498, 1.0
      %v523 = vadd.f32 %v500, 1.0
      %v524 = vadd.f32 %v502, 1.0
      %v525 = vadd.f32 %v504, 1.0
      %v526 = vadd.f32 %v506, 1.0
      %v527 = vadd.f32 %v508, 1.0
      %v528 = vadd.f32 %v510, 1.0
      %v529 = vadd.f32 %v512, 1.0
      %v530 = vadd.f32 %v514, 1.0
      %v531 = vrcp.pop %v515
      %v532 = vrcp.pop %v516
      %v533 = vrcp.pop %v517
      %v534 = vrcp.pop %v518
      %v535 = vrcp.pop %v519
      %v536 = vrcp.pop %v520
      %v537 = vrcp.pop %v521
      %v538 = vrcp.pop %v522
      %v539 = vrcp.pop %v523
      %v540 = vrcp.pop %v524
      %v541 = vrcp.pop %v525
      %v542 = vrcp.pop %v526
      %v543 = vrcp.pop %v527
      %v544 = vrcp.pop %v528
      %v545 = vrcp.pop %v529
      %v546 = vrcp.pop %v530
      %vm547 = vcmp.gt.f32.partialorder %v375, 20.0
      %vm548 = vcmp.gt.f32.partialorder %v379, 20.0
      %vm549 = vcmp.gt.f32.partialorder %v385, 20.0
      %vm550 = vcmp.gt.f32.partialorder %v389, 20.0
      %vm551 = vcmp.gt.f32.partialorder %v395, 20.0
      %vm552 = vcmp.gt.f32.partialorder %v399, 20.0
      %vm553 = vcmp.gt.f32.partialorder %v405, 20.0
      %vm554 = vcmp.gt.f32.partialorder %v409, 20.0
      %vm555 = vcmp.gt.f32.partialorder %v415, 20.0
      %vm556 = vcmp.gt.f32.partialorder %v419, 20.0
      %vm557 = vcmp.gt.f32.partialorder %v425, 20.0
      %vm558 = vcmp.gt.f32.partialorder %v429, 20.0
      %vm559 = vcmp.gt.f32.partialorder %v435, 20.0
      %vm560 = vcmp.gt.f32.partialorder %v439, 20.0
      %vm561 = vcmp.gt.f32.partialorder %v445, 20.0
      %vm562 = vcmp.gt.f32.partialorder %v449, 20.0
      %v563 = vmin.f32 %v375, 20.0
      %v564 = vmin.f32 %v379, 20.0
      %v565 = vmin.f32 %v385, 20.0
      %v566 = vmin.f32 %v389, 20.0
      %v567 = vmin.f32 %v395, 20.0
      %v568 = vmin.f32 %v399, 20.0
      %v569 = vmin.f32 %v405, 20.0
      %v570 = vmin.f32 %v409, 20.0
      %v571 = vmin.f32 %v415, 20.0
      %v572 = vmin.f32 %v419, 20.0
      %v573 = vmin.f32 %v425, 20.0
      %v574 = vmin.f32 %v429, 20.0
      %v575 = vmin.f32 %v435, 20.0
      %v576 = vmin.f32 %v439, 20.0
      %v577 = vmin.f32 %v445, 20.0
      %v578 = vmin.f32 %v449, 20.0
      %v579 = vmul.f32 %v563, 1.442695
      %v580 = vpow.pop %v579
      %v581 = vmul.f32 %v564, 1.442695
      %v582 = vpow.pop %v581
      %v583 = vmul.f32 %v565, 1.442695
      %v584 = vpow.pop %v583
      %v585 = vmul.f32 %v566, 1.442695
      %v586 = vpow.pop %v585
      %v587 = vmul.f32 %v567, 1.442695
      %v588 = vpow.pop %v587
      %v589 = vmul.f32 %v568, 1.442695
      %v590 = vpow.pop %v589
      %v591 = vmul.f32 %v569, 1.442695
      %v592 = vpow.pop %v591
      %v593 = vmul.f32 %v570, 1.442695
      %v594 = vpow.pop %v593
      %v595 = vmul.f32 %v571, 1.442695
      %v596 = vpow.pop %v595
      %v597 = vmul.f32 %v572, 1.442695
      %v598 = vpow.pop %v597
      %v599 = vmul.f32 %v573, 1.442695
      %v600 = vpow.pop %v599
      %v601 = vmul.f32 %v574, 1.442695
      %v602 = vpow.pop %v601
      %v603 = vmul.f32 %v575, 1.442695
      %v604 = vpow.pop %v603
      %v605 = vmul.f32 %v576, 1.442695
      %v606 = vpow.pop %v605
      %v607 = vmul.f32 %v577, 1.442695
      %v608 = vpow.pop %v607
      %v609 = vmul.f32 %v578, 1.442695
      %v610 = vpow.pop %v609
      %v611 = vadd.f32 %v580, 1.0
      %v612 = vadd.f32 %v582, 1.0
      %v613 = vadd.f32 %v584, 1.0
      %v614 = vadd.f32 %v586, 1.0
      %v615 = vadd.f32 %v588, 1.0
      %v616 = vadd.f32 %v590, 1.0
      %v617 = vadd.f32 %v592, 1.0
      %v618 = vadd.f32 %v594, 1.0
      %v619 = vadd.f32 %v596, 1.0
      %v620 = vadd.f32 %v598, 1.0
      %v621 = vadd.f32 %v600, 1.0
      %v622 = vadd.f32 %v602, 1.0
      %v623 = vadd.f32 %v604, 1.0
      %v624 = vadd.f32 %v606, 1.0
      %v625 = vadd.f32 %v608, 1.0
      %v626 = vadd.f32 %v610, 1.0
      %v627 = vlog2.pop %v611
      %v628 = vmul.f32 %v627, 0.6931472
      %v629 = vlog2.pop %v612
      %v630 = vmul.f32 %v629, 0.6931472
      %v631 = vlog2.pop %v613
      %v632 = vmul.f32 %v631, 0.6931472
      %v633 = vlog2.pop %v614
      %v634 = vmul.f32 %v633, 0.6931472
      %v635 = vlog2.pop %v615
      %v636 = vmul.f32 %v635, 0.6931472
      %v637 = vlog2.pop %v616
      %v638 = vmul.f32 %v637, 0.6931472
      %v639 = vlog2.pop %v617
      %v640 = vmul.f32 %v639, 0.6931472
      %v641 = vlog2.pop %v618
      %v642 = vmul.f32 %v641, 0.6931472
      %v643 = vlog2.pop %v619
      %v644 = vmul.f32 %v643, 0.6931472
      %v645 = vlog2.pop %v620
      %v646 = vmul.f32 %v645, 0.6931472
      %v647 = vlog2.pop %v621
      %v648 = vmul.f32 %v647, 0.6931472
      %v649 = vlog2.pop %v622
      %v650 = vmul.f32 %v649, 0.6931472
      %v651 = vlog2.pop %v623
      %v652 = vmul.f32 %v651, 0.6931472
      %v653 = vlog2.pop %v624
      %v654 = vmul.f32 %v653, 0.6931472
      %v655 = vlog2.pop %v625
      %v656 = vmul.f32 %v655, 0.6931472
      %v657 = vlog2.pop %v626
      %v658 = vmul.f32 %v657, 0.6931472
      %v659 = vsel %vm547, %v375, %v628
      %v660 = vsel %vm548, %v379, %v630
      %v661 = vsel %vm549, %v385, %v632
      %v662 = vsel %vm550, %v389, %v634
      %v663 = vsel %vm551, %v395, %v636
      %v664 = vsel %vm552, %v399, %v638
      %v665 = vsel %vm553, %v405, %v640
      %v666 = vsel %vm554, %v409, %v642
      %v667 = vsel %vm555, %v415, %v644
      %v668 = vsel %vm556, %v419, %v646
      %v669 = vsel %vm557, %v425, %v648
      %v670 = vsel %vm558, %v429, %v650
      %v671 = vsel %vm559, %v435, %v652
      %v672 = vsel %vm560, %v439, %v654
      %v673 = vsel %vm561, %v445, %v656
      %v674 = vsel %vm562, %v449, %v658
      %v675 = vmul.f32 %v531, %v659
      %v676 = vmul.f32 %v532, %v660
      %v677 = vmul.f32 %v533, %v661
      %v678 = vmul.f32 %v534, %v662
      %v679 = vmul.f32 %v535, %v663
      %v680 = vmul.f32 %v536, %v664
      %v681 = vmul.f32 %v537, %v665
      %v682 = vmul.f32 %v538, %v666
      %v683 = vmul.f32 %v539, %v667
      %v684 = vmul.f32 %v540, %v668
      %v685 = vmul.f32 %v541, %v669
      %v686 = vmul.f32 %v542, %v670
      %v687 = vmul.f32 %v543, %v671
      %v688 = vmul.f32 %v544, %v672
      %v689 = vmul.f32 %v545, %v673
      %v690 = vmul.f32 %v546, %v674
      %v691 = vpack.c.bf16 %v676, %v675
      %v692 = vpack.c.bf16 %v678, %v677
      %v693 = vpack.c.bf16 %v680, %v679
      %v694 = vpack.c.bf16 %v682, %v681
      %v695 = vpack.c.bf16 %v684, %v683
      %v696 = vpack.c.bf16 %v686, %v685
      %v697 = vpack.c.bf16 %v688, %v687
      %v698 = vpack.c.bf16 %v690, %v689
      %v699 = vld [vmem:[%s133] sm:$0x1]
      %s700 = smul.u32 0, 8
      %v701 = vstv %s700
      %v702 = vsub.s32 %v699, %v701
      %v703 = vlaneseq
      %v704 = vshrl.u32 %v703, 7
      %v705 = vlaneseq
      %v706 = vshrl.u32 %v705, 7
      %v707 = vsub.s32 0, %v706
      %v708 = vrot.slane %v702, %v707
      %vm709 = vcmp.eq.s32.totalorder %v704, %v708
      %v710 = vsel %vm709, 1, 0
      %v711 = vcvt.s32.f32 %v710
      %v712 = vpack.c.bf16 %v711, %v711
      %v713 = vld [vmem:[#allocation2] sm:$0xff]
      %714 = vmatprep.subr.bf16.mxu0 0
      %715 = vmatpush1.bf16.msra.mxu0 %v691
      %716 = vmatprep.subr.bf16.mxu0 0
      %717 = vmatpush1.bf16.msra.mxu0 %v692
      %718 = vmatprep.subr.bf16.mxu0 0
      %719 = vmatpush1.bf16.msra.mxu0 %v693
      %720 = vmatprep.subr.bf16.mxu0 0
      %721 = vmatpush1.bf16.msra.mxu0 %v694
      %722 = vmatprep.subr.bf16.mxu0 0
      %723 = vmatpush1.bf16.msra.mxu0 %v695
      %724 = vmatprep.subr.bf16.mxu0 0
      %725 = vmatpush1.bf16.msra.mxu0 %v696
      %726 = vmatprep.subr.bf16.mxu0 0
      %727 = vmatpush1.bf16.msra.mxu0 %v697
      %728 = vmatprep.subr.bf16.mxu0 0
      %729 = vmatpush1.bf16.msra.mxu0 %v698
      %730 = vmatprep.subr.bf16.mxu0 0
      %731 = vmatpush1.bf16.msra.mxu0 0
      %732 = vmatprep.subr.bf16.mxu0 0
      %733 = vmatpush1.bf16.msra.mxu0 0
      %734 = vmatprep.subr.bf16.mxu0 0
      %735 = vmatpush1.bf16.msra.mxu0 0
      %736 = vmatprep.subr.bf16.mxu0 0
      %737 = vmatpush1.bf16.msra.mxu0 0
      %738 = vmatprep.subr.bf16.mxu0 0
      %739 = vmatpush1.bf16.msra.mxu0 0
      %740 = vmatprep.subr.bf16.mxu0 0
      %741 = vmatpush1.bf16.msra.mxu0 0
      %742 = vmatprep.subr.bf16.mxu0 0
      %743 = vmatpush1.bf16.msra.mxu0 0
      %744 = vmatprep.subr.bf16.mxu0 0
      %745 = vmatpush1.bf16.msra.mxu0 0
      %746 = vmatprep.mubr.bf16.mxu0 0
      %747 = vmatmul.mubr.bf16.gmra.mrb[0].mxu0 %v712
      %v748 = vpop.f32.mrb[0].mxu0
      %v749 = vadd.f32 0.0, %v748
      %v750 = vpop.f32.mrb[0].mxu0
      %v751 = vpop.f32.mrb[0].mxu0
      %v752 = vpop.f32.mrb[0].mxu0
      %753 = vdwg.mxu0
      %v754 = vadd.f32 %v713, %v749
      %755 = vst [vmem:[#allocation2] sm:$0xff] %v754
    $region49: #{tpu_custom_call.1} parent=1 // pred_fallthru
      _
    // Predicated region
    $region50: #{tpu_custom_call.1} parent=1 // pred_check
      %p756 = pneg %p156
    $region51: #{tpu_custom_call.1} parent=1 // pred_check_branch
      %758 = sbr.rel (%p756) target = $region53
    $region52: #{tpu_custom_call.1} parent=1 // pred_region
      %v759 = vld [vmem:[%s4] sm:$0xff]
      %v760 = vld [vmem:[#allocation2] sm:$0xff]
      %v761 = vadd.f32 %v759, %v760
      %v762 = vld [vmem:[#allocation11] sm:$0xff]
      %v763 = vld [vmem:[#allocation11 + $0x8] sm:$0xff]
      %v764 = vld [vmem:[#allocation11 + $0x10] sm:$0xff]
      %v765 = vld [vmem:[#allocation11 + $0x18] sm:$0xff]
      %v766 = vld [vmem:[#allocation11 + $0x20] sm:$0xff]
      %v767 = vld [vmem:[#allocation11 + $0x28] sm:$0xff]
      %v768 = vld [vmem:[#allocation11 + $0x30] sm:$0xff]
      %v769 = vld [vmem:[#allocation11 + $0x38] sm:$0xff]
      %v770 = vld [vmem:[#allocation11 + $0x40] sm:$0xff]
      %v771 = vld [vmem:[#allocation11 + $0x48] sm:$0xff]
      %v772 = vld [vmem:[#allocation11 + $0x50] sm:$0xff]
      %v773 = vld [vmem:[#allocation11 + $0x58] sm:$0xff]
      %v774 = vld [vmem:[#allocation11 + $0x60] sm:$0xff]
      %v775 = vld [vmem:[#allocation11 + $0x68] sm:$0xff]
      %v776 = vld [vmem:[#allocation11 + $0x70] sm:$0xff]
      %v777 = vld [vmem:[#allocation11 + $0x78] sm:$0xff]
      %v778 = vld [vmem:[%s8] sm:$0x1]
      %v780 = vlaneseq
      %v781 = vshrl.u32 %v780, 7
      %v782 = vsub.s32 0, %v781
      %v783 = vrot.slane %v778, %v782
      %785 = vmatprep.subr.mxu0 0.0
      %786 = vmatpush1.msra.mxu0 %v762
      %787 = vmatprep.subr.mxu0 0.0
      %788 = vmatpush1.msra.mxu0 %v763
      %789 = vmatprep.subr.mxu0 0.0
      %790 = vmatpush1.msra.mxu0 %v764
      %791 = vmatprep.subr.mxu0 0.0
      %792 = vmatpush1.msra.mxu0 %v765
      %793 = vmatprep.subr.mxu0 0.0
      %794 = vmatpush1.msra.mxu0 %v766
      %795 = vmatprep.subr.mxu0 0.0
      %796 = vmatpush1.msra.mxu0 %v767
      %797 = vmatprep.subr.mxu0 0.0
      %798 = vmatpush1.msra.mxu0 %v768
      %799 = vmatprep.subr.mxu0 0.0
      %800 = vmatpush1.msra.mxu0 %v769
      %801 = vmatprep.subr.mxu0 0.0
      %802 = vmatpush1.msra.mxu0 %v770
      %803 = vmatprep.subr.mxu0 0.0
      %804 = vmatpush1.msra.mxu0 %v771
      %805 = vmatprep.subr.mxu0 0.0
      %806 = vmatpush1.msra.mxu0 %v772
      %807 = vmatprep.subr.mxu0 0.0
      %808 = vmatpush1.msra.mxu0 %v773
      %809 = vmatprep.subr.mxu0 0.0
      %810 = vmatpush1.msra.mxu0 %v774
      %811 = vmatprep.subr.mxu0 0.0
      %812 = vmatpush1.msra.mxu0 %v775
      %813 = vmatprep.subr.mxu0 0.0
      %814 = vmatpush1.msra.mxu0 %v776
      %815 = vmatprep.subr.mxu0 0.0
      %816 = vmatpush1.msra.mxu0 %v777
      %817 = vmatprep.subr.mxu0 0.0
      %818 = vmatpush1.msra.mxu0 0.0
      %819 = vmatprep.subr.mxu0 0.0
      %820 = vmatpush1.msra.mxu0 0.0
      %821 = vmatprep.subr.mxu0 0.0
      %822 = vmatpush1.msra.mxu0 0.0
      %823 = vmatprep.subr.mxu0 0.0
      %824 = vmatpush1.msra.mxu0 0.0
      %825 = vmatprep.subr.mxu0 0.0
      %826 = vmatpush1.msra.mxu0 0.0
      %827 = vmatprep.subr.mxu0 0.0
      %828 = vmatpush1.msra.mxu0 0.0
      %829 = vmatprep.subr.mxu0 0.0
      %830 = vmatpush1.msra.mxu0 0.0
      %831 = vmatprep.subr.mxu0 0.0
      %832 = vmatpush1.msra.mxu0 0.0
      %833 = vmatprep.subr.mxu0 0.0
      %834 = vmatpush1.msra.mxu0 0.0
      %835 = vmatprep.subr.mxu0 0.0
      %836 = vmatpush1.msra.mxu0 0.0
      %837 = vmatprep.subr.mxu0 0.0
      %838 = vmatpush1.msra.mxu0 0.0
      %839 = vmatprep.subr.mxu0 0.0
      %840 = vmatpush1.msra.mxu0 0.0
      %841 = vmatprep.subr.mxu0 0.0
      %842 = vmatpush1.msra.mxu0 0.0
      %843 = vmatprep.subr.mxu0 0.0
      %844 = vmatpush1.msra.mxu0 0.0
      %845 = vmatprep.subr.mxu0 0.0
      %846 = vmatpush1.msra.mxu0 0.0
      %847 = vmatprep.subr.mxu0 0.0
      %848 = vmatpush1.msra.mxu0 0.0
      %849 = vmatprep.mubr.f32.mxu0 0.0
      %850 = vmatmul.mubr.f32.gmra.mrb[0].mxu0 %v761
      %v851 = vpop.f32.mrb[0].mxu0
      %v852 = vadd.f32 %v783, %v851
      %v853 = vpop.f32.mrb[0].mxu0
      %854 = vdwg.mxu0
      %v855 = vmax.f32 %v852, 0.0
      %856 = vst [vmem:[#allocation12] sm:$0xff] %v855
    $region53: #{tpu_custom_call.1} parent=1 // pred_fallthru
      _
    // Predicated region
    $region54: #{tpu_custom_call.1} parent=1 // pred_check
      _
    $region55: #{tpu_custom_call.1} parent=1 // pred_check_branch
      %858 = sbr.rel (0) target = $region57
    $region56: #{tpu_custom_call.1} parent=1 // pred_region
      %s860 = ssub.s32 128, 128
      %861 = vsyncadd [#allocation8], %s860
      %s863 = sshll.u32 [#allocation12], 4
      %s864 = int_to_ptr.vmem [resolvable:$true] %s863
      %866 = dma.vmem_to_hbm [thread:$0]  %s864, 128, %s9, [#allocation8]
    $region57: #{tpu_custom_call.1} parent=1 // pred_fallthru
      _
    // Predicated region
    $region58: #{tpu_custom_call.1} parent=1 // pred_check
      _
    $region59: #{tpu_custom_call.1} parent=1 // pred_check_branch
      %868 = sbr.rel (0) target = $region61
    $region60: #{tpu_custom_call.1} parent=1 // pred_region
      %869 = dma.done [#allocation8], 128
    $region61: #{tpu_custom_call.1} parent=1 // pred_fallthru
      _
    %870 = vsyncpa [#allocation7], 1
    %871 = vsyncpa [#allocation10], 1
    %872 = vsyncpa [#allocation8], 1

</llo_original>
